<compile_context>
chip_gen: v5e
topology: v5e:2x2
jax: 0.10.0
libtpu: 0.0.40
codegen_flags: <defaults>
</compile_context>

<pallas_src>
import functools

import jax
import jax.numpy as jnp
from jax.experimental import pallas as pl
from jax.experimental.pallas import tpu as pltpu


def linear_add_kernel(x_ref, wb_ref, other_ref, o_ref):
    # x:     (B, IN)     f32
    # wb:    (IN+1, OUT) f32  -- rows 0..IN-1 = W^T, row IN = bias
    # other: (B, OUT)    f32  (aliased with the output buffer)
    x = x_ref[...]
    wb = wb_ref[...]
    n_in = x_ref.shape[1]

    # Start from residual + bias (VPU), then fully unrolled K=3 mul-adds.
    acc = other_ref[...] + wb[n_in:n_in + 1, :]
    for k in range(n_in):
        acc = acc + x[:, k:k + 1] * wb[k:k + 1, :]
    o_ref[...] = acc.astype(o_ref.dtype)


def pack_params(w, b):
    """Pack Linear params once: (OUT, IN) weight + (OUT,) bias -> (IN+1, OUT)."""
    return jnp.concatenate([w.T, b[None, :]], axis=0).astype(jnp.float32)


@functools.partial(jax.jit, donate_argnums=(2,))
def linear_add(x, wb, other):
    """x: (B, IN), wb: (IN+1, OUT) packed [W^T; b], other: (B, OUT) -> (B, OUT).

    `other` is donated and aliased into the output buffer: callers must not
    read `other` after this call.
    """
    B, IN = x.shape
    OUT = wb.shape[1]

    cost = pl.CostEstimate(
        flops=2 * B * IN * OUT + 2 * B * OUT,
        transcendentals=0,
        bytes_accessed=4 * (B * IN + (IN + 1) * OUT + 2 * B * OUT),
    )

    vmem = pl.BlockSpec(memory_space=pltpu.MemorySpace.VMEM)
    return pl.pallas_call(
        linear_add_kernel,
        out_shape=jax.ShapeDtypeStruct((B, OUT), jnp.float32),
        in_specs=[vmem, vmem, vmem],
        out_specs=vmem,
        input_output_aliases={2: 0},   # result reuses `other`'s (donated) buffer
        cost_estimate=cost,
    )(x, wb, other)


if __name__ == "__main__":
    key = jax.random.PRNGKey(0)
    k_x, k_w, k_b, k_o = jax.random.split(key, 4)

    B, IN, OUT = 1, 3, 8
    # Deterministic "parameters" (shapes match torch.nn.Linear(3, 8)).
    w = jax.random.normal(k_w, (OUT, IN), dtype=jnp.float32) * 0.1
    b = jax.random.normal(k_b, (OUT,), dtype=jnp.float32) * 0.1
    # Inputs (x1 = randn(1, 3), __other__ = randn(1, 8)).
    x = jax.random.normal(k_x, (B, IN), dtype=jnp.float32)
    other = jax.random.normal(k_o, (B, OUT), dtype=jnp.float32)

    # Pack parameters once ("init time").
    wb = pack_params(w, b)

    # Reference must be computed BEFORE the call: `other` is donated/aliased
    # into the kernel's output buffer and is invalid afterwards.
    ref = x @ w.T + b + other

    out = jax.block_until_ready(linear_add(x, wb, other))

    assert out.shape == (B, OUT)
    assert jnp.allclose(out, ref, atol=1e-5, rtol=1e-5)
    print("KERNEL_OK")
</pallas_src>

<mosaic_0001>
module attributes {stable_mosaic.version = 11 : i64} {
  func.func @linear_add_kernel(%arg0: memref<1x3xf32, #tpu.memory_space<vmem>>, %arg1: memref<4x8xf32, #tpu.memory_space<vmem>>, %arg2: memref<1x8xf32, #tpu.memory_space<vmem>>, %arg3: memref<1x8xf32, #tpu.memory_space<vmem>>) attributes {dimension_semantics = [], scalar_prefetch = 0 : i64, scratch_operands = 0 : i64, tpu.core_type = #tpu.core_type<tc>} {
    %c0 = arith.constant 0 : index
    %c0_0 = arith.constant 0 : index
    %0 = vector.load %arg0[%c0, %c0_0] : memref<1x3xf32, #tpu.memory_space<vmem>>, vector<1x3xf32>
    %c0_1 = arith.constant 0 : index
    %c0_2 = arith.constant 0 : index
    %1 = vector.load %arg1[%c0_1, %c0_2] : memref<4x8xf32, #tpu.memory_space<vmem>>, vector<4x8xf32>
    %c0_3 = arith.constant 0 : index
    %c0_4 = arith.constant 0 : index
    %2 = vector.load %arg2[%c0_3, %c0_4] : memref<1x8xf32, #tpu.memory_space<vmem>>, vector<1x8xf32>
    %3 = vector.extract_strided_slice %1 {offsets = [3, 0], sizes = [1, 8], strides = [1, 1]} : vector<4x8xf32> to vector<1x8xf32>
    %4 = arith.addf %2, %3 : vector<1x8xf32>
    %5 = vector.extract_strided_slice %0 {offsets = [0, 0], sizes = [1, 1], strides = [1, 1]} : vector<1x3xf32> to vector<1x1xf32>
    %6 = vector.extract_strided_slice %1 {offsets = [0, 0], sizes = [1, 8], strides = [1, 1]} : vector<4x8xf32> to vector<1x8xf32>
    %7 = vector.broadcast %5 : vector<1x1xf32> to vector<1x8xf32>
    %8 = arith.mulf %7, %6 : vector<1x8xf32>
    %9 = arith.addf %4, %8 : vector<1x8xf32>
    %10 = vector.extract_strided_slice %0 {offsets = [0, 1], sizes = [1, 1], strides = [1, 1]} : vector<1x3xf32> to vector<1x1xf32>
    %11 = vector.extract_strided_slice %1 {offsets = [1, 0], sizes = [1, 8], strides = [1, 1]} : vector<4x8xf32> to vector<1x8xf32>
    %12 = vector.broadcast %10 : vector<1x1xf32> to vector<1x8xf32>
    %13 = arith.mulf %12, %11 : vector<1x8xf32>
    %14 = arith.addf %9, %13 : vector<1x8xf32>
    %15 = vector.extract_strided_slice %0 {offsets = [0, 2], sizes = [1, 1], strides = [1, 1]} : vector<1x3xf32> to vector<1x1xf32>
    %16 = vector.extract_strided_slice %1 {offsets = [2, 0], sizes = [1, 8], strides = [1, 1]} : vector<4x8xf32> to vector<1x8xf32>
    %17 = vector.broadcast %15 : vector<1x1xf32> to vector<1x8xf32>
    %18 = arith.mulf %17, %16 : vector<1x8xf32>
    %19 = arith.addf %14, %18 : vector<1x8xf32>
    %c0_5 = arith.constant 0 : index
    %c0_6 = arith.constant 0 : index
    %20 = vector.load %arg3[%c0_5, %c0_6] : memref<1x8xf32, #tpu.memory_space<vmem>>, vector<1x8xf32>
    tpu.vector_store %arg3[%c0_5, %c0_6], %19 {strides = array<i32>} : memref<1x8xf32, #tpu.memory_space<vmem>>, vector<1x8xf32>,
    return
  }
}

</mosaic_0001>

<llo_original>
// kernel: linear_add.1
$region0: #{linear_add.1}
  #allocation0 [shape = 'u32[]', space=smem, size = 0x4, offset = 0x4, fixed_abs, tag = 'smem constant byte address 0x4 - core index']
  #allocation1 [shape = 'u32[72,128]{1,0:T(1,128)}', space=vmem, size = 0x9000, scoped, tag = 'internal scratch']
  %s0 = inlined_call_operand.hbm [shape: f32[1,3], index: 0, kind: input, shape index: {}]
  %s1 = inlined_call_operand.hbm [shape: f32[4,8], index: 1, kind: input, shape index: {}]
  %s2 = inlined_call_operand.hbm [shape: f32[1,8], index: 2, kind: input, shape index: {}, may-alias: {2,3}]
  %s3 = inlined_call_operand.hbm [shape: f32[1,8], index: 3, kind: output, shape index: {}, may-alias: {2,3}]
  %s4 = sld [smem:[#allocation0]]
  $region34: #{linear_add.1} parent=0
    _
  %s6 = ssub.s32 1, %s4
  %s7 = scalar_select 0, %s6, %s4
  $region1: #{linear_add.1} parent=0
    #allocation2 [shape = 'u8[512]{0}', space=vmem, size = 0x400, scoped, tag = 'input window, operand 0, single buffered']
    #allocation3 [shape = 's32[1]{0}', space=sflag, size = 0x4, scoped, tag = 'scoped memory for linear_add.1']
    #allocation4 [shape = 's32[1]{0}', space=sflag, size = 0x4, scoped, tag = 'scoped memory for linear_add.1']
    #allocation5 [shape = 'u8[2048]{0}', space=vmem, size = 0x800, scoped, tag = 'input window, operand 1, single buffered']
    #allocation6 [shape = 's32[1]{0}', space=sflag, size = 0x4, scoped, tag = 'scoped memory for linear_add.1']
    #allocation7 [shape = 'u8[512]{0}', space=vmem, size = 0x400, scoped, tag = 'input window, operand 2, single buffered']
    #allocation8 [shape = 'u8[512]{0}', space=vmem, size = 0x400, scoped, tag = 'output window, operand 0, single buffered']
    %8 = vsyncpa [#allocation3], 0
    %9 = vsyncpa [#allocation6], 0
    %10 = vsyncpa [#allocation4], 0
    // Predicated region
    $region2: #{linear_add.1} parent=1 // pred_check
      _
    $region3: #{linear_add.1} parent=1 // pred_check_branch
      %12 = sbr.rel (0) target = $region5
    $region4: #{linear_add.1} parent=1 // pred_region
      %14 = vsyncadd [#allocation3], 0
      %s16 = sshll.u32 %s0, 4
      %s17 = int_to_ptr.hbm [resolvable:$true] %s16
      %s18 = sshll.u32 [#allocation2], 4
      %s19 = int_to_ptr.vmem [resolvable:$true] %s18
      %21 = dma.hbm_to_vmem [thread:$0]  %s17, 16, %s19, [#allocation3]
    $region5: #{linear_add.1} parent=1 // pred_fallthru
      _
    // Predicated region
    $region6: #{linear_add.1} parent=1 // pred_check
      _
    $region7: #{linear_add.1} parent=1 // pred_check_branch
      %23 = sbr.rel (0) target = $region9
    $region8: #{linear_add.1} parent=1 // pred_region
      %25 = vsyncadd [#allocation6], 0
      %s27 = sshll.u32 %s1, 4
      %s28 = int_to_ptr.hbm [resolvable:$true] %s27
      %s29 = sshll.u32 [#allocation5], 4
      %s30 = int_to_ptr.vmem [resolvable:$true] %s29
      %32 = dma.hbm_to_vmem [thread:$0]  %s28, 64, %s30, [#allocation6]
    $region9: #{linear_add.1} parent=1 // pred_fallthru
      _
    // Predicated region
    $region10: #{linear_add.1} parent=1 // pred_check
      _
    $region11: #{linear_add.1} parent=1 // pred_check_branch
      %34 = sbr.rel (0) target = $region13
    $region12: #{linear_add.1} parent=1 // pred_region
      %36 = vsyncadd [#allocation6], 0
      %s38 = sshll.u32 %s2, 4
      %s39 = int_to_ptr.hbm [resolvable:$true] %s38
      %s40 = sshll.u32 [#allocation7], 4
      %s41 = int_to_ptr.vmem [resolvable:$true] %s40
      %43 = dma.hbm_to_vmem [thread:$0]  %s39, 16, %s41, [#allocation6]
    $region13: #{linear_add.1} parent=1 // pred_fallthru
      _
    // Predicated region
    $region14: #{linear_add.1} parent=1 // pred_check
      _
    $region15: #{linear_add.1} parent=1 // pred_check_branch
      %45 = sbr.rel (0) target = $region17
    $region16: #{linear_add.1} parent=1 // pred_region
      %47 = dma.done [#allocation3], 16
    $region17: #{linear_add.1} parent=1 // pred_fallthru
      _
    // Predicated region
    $region18: #{linear_add.1} parent=1 // pred_check
      _
    $region19: #{linear_add.1} parent=1 // pred_check_branch
      %49 = sbr.rel (0) target = $region21
    $region20: #{linear_add.1} parent=1 // pred_region
      %51 = dma.done [#allocation6], 64
    $region21: #{linear_add.1} parent=1 // pred_fallthru
      _
    // Predicated region
    $region22: #{linear_add.1} parent=1 // pred_check
      _
    $region23: #{linear_add.1} parent=1 // pred_check_branch
      %53 = sbr.rel (0) target = $region25
    $region24: #{linear_add.1} parent=1 // pred_region
      %55 = dma.done [#allocation6], 16
    $region25: #{linear_add.1} parent=1 // pred_fallthru
      _
    %v56 = vld [vmem:[#allocation2] sm:$0x1]
    %v57 = vld [vmem:[#allocation5] sm:$0xf]
    %v58 = vld [vmem:[#allocation7] sm:$0x1]
    %60 = vst [vmem:[#allocation1] sm:$0xff] %v57
    %s61 = scalar_lea.vmem [#allocation1], 3
    %v62 = vld [vmem:[%s61] ss:$9 sm:$0xff]
    %v64 = vadd.f32 %v58, %v62
    %66 = vset.pattern.permute.xlu0 0
    %67 = vperm.xlu0 %66, %v56
    %v68 = vpop.permute.xlu0 %67
    %v70 = vperm.slane %v68, 0
    %v71 = vmul.f32 %v70, %v57
    %v72 = vadd.f32 %v64, %v71
    %73 = vset.pattern.permute.xlu0 1
    %74 = vperm.xlu0 %73, %v56
    %v75 = vpop.permute.xlu0 %74
    %v77 = vperm.slane %v75, 0
    %v78 = vmul.f32 %v77, %v57
    %80 = vst [vmem:[#allocation1] sm:$0xff] %v78
    %s81 = scalar_lea.vmem [#allocation1], 1
    %v82 = vld [vmem:[%s81] ss:$9 sm:$0xff]
    %v84 = vadd.f32 %v72, %v82
    %85 = vset.pattern.permute.xlu0 2
    %86 = vperm.xlu0 %85, %v56
    %v87 = vpop.permute.xlu0 %86
    %v89 = vperm.slane %v87, 0
    %v90 = vmul.f32 %v89, %v57
    %92 = vst [vmem:[#allocation1] sm:$0xff] %v90
    %s93 = scalar_lea.vmem [#allocation1], 2
    %v94 = vld [vmem:[%s93] ss:$9 sm:$0xff]
    %v96 = vadd.f32 %v84, %v94
    %vm97 = vcmask 57344
    %98 = vst.msk [vmem:[#allocation8] sm:$0x1] %vm97, %v96
    // Predicated region
    $region26: #{linear_add.1} parent=1 // pred_check
      _
    $region27: #{linear_add.1} parent=1 // pred_check_branch
      %100 = sbr.rel (0) target = $region29
    $region28: #{linear_add.1} parent=1 // pred_region
      %102 = vsyncadd [#allocation4], 0
      %s104 = sshll.u32 [#allocation8], 4
      %s105 = int_to_ptr.vmem [resolvable:$true] %s104
      %s106 = sshll.u32 %s3, 4
      %s107 = int_to_ptr.hbm [resolvable:$true] %s106
      %109 = dma.vmem_to_hbm [thread:$0]  %s105, 16, %s107, [#allocation4]
    $region29: #{linear_add.1} parent=1 // pred_fallthru
      _
    // Predicated region
    $region30: #{linear_add.1} parent=1 // pred_check
      _
    $region31: #{linear_add.1} parent=1 // pred_check_branch
      %111 = sbr.rel (0) target = $region33
    $region32: #{linear_add.1} parent=1 // pred_region
      %113 = dma.done [#allocation4], 16
    $region33: #{linear_add.1} parent=1 // pred_fallthru
      _
    %114 = vsyncpa [#allocation3], 1
    %115 = vsyncpa [#allocation6], 1
    %116 = vsyncpa [#allocation4], 1

</llo_original>
